<compile_context>
chip_gen: v5e
topology: v5e:2x2
jax: 0.10.0
libtpu: 0.0.40
codegen_flags: <defaults>
</compile_context>

<pallas_src>
import functools

import jax
import jax.numpy as jnp
import numpy as np
from jax import lax
from jax.experimental import pallas as pl
from jax.experimental.pallas import tpu as pltpu

BN_EPS = 1e-5


def _round_up(a, b):
    return (a + b - 1) // b * b


def conv_bn_prelu_kernel(alpha_ref, w_ref, patches_ref, gamma_ref, beta_ref,
                         out_ref, *, inv_count):
    # Conv as one MXU matmul: (C_out, K) @ (K, M_pad) -> (C_out, M_pad), f32 accumulate.
    x = jnp.dot(w_ref[...], patches_ref[...], preferred_element_type=jnp.float32)

    # Per-channel batch stats in a single pass over x (lane/XLU reductions).
    # Zero-padded M columns produce 0 conv output, so they contribute 0 to both sums.
    s = jnp.sum(x, axis=1, keepdims=True)                    # (C_out, 1)
    ssq = jnp.sum(x * x, axis=1, keepdims=True)              # (C_out, 1)
    mean = s * inv_count
    var = jnp.maximum(ssq * inv_count - mean * mean, 0.0)    # clamp: avoid rsqrt(<0)

    # BatchNorm folded into one per-channel FMA.
    scale = gamma_ref[...] * lax.rsqrt(var + BN_EPS)
    shift = beta_ref[...] - mean * scale
    y = x * scale + shift

    a = alpha_ref[0]                                         # shared PReLU slope (SMEM)
    out_ref[...] = jnp.where(y >= 0.0, y, a * y)


@jax.jit
def model_with_prelu(x, conv_w, gamma, beta, alpha):
    """x: (N, C_in, H, W) float32 NCHW. Returns (N, C_out, H_out, W_out)."""
    N, C_in, H, W = x.shape
    C_out = conv_w.shape[0]
    kh = kw = 2
    stride = 2
    pad = 2

    Hp, Wp = H + 2 * pad, W + 2 * pad
    Ho, Wo = (Hp - kh) // stride + 1, (Wp - kw) // stride + 1
    M = N * Ho * Wo
    K = C_in * kh * kw

    # ---- im2col, transposed to (K, M): stride == kernel => non-overlapping 2x2 blocks
    # of the padded image.  K ordering (ci, kh, kw) matches conv_w.reshape(C_out, K).
    xp = jnp.pad(x, ((0, 0), (0, 0), (pad, pad), (pad, pad)))
    patches = xp.reshape(N, C_in, Ho, kh, Wo, kw)
    patches_t = patches.transpose(1, 3, 5, 0, 2, 4).reshape(K, M)   # (K, M)

    # Lane-dense output: M on the lane axis, zero-padded to a multiple of 128.
    M_pad = _round_up(M, 128)
    if M_pad != M:
        patches_t = jnp.pad(patches_t, ((0, 0), (0, M_pad - M)))

    w2d = conv_w.reshape(C_out, K)            # free reshape; no channel padding needed
    gamma_c = gamma.reshape(C_out, 1)
    beta_c = beta.reshape(C_out, 1)

    kernel = functools.partial(conv_bn_prelu_kernel, inv_count=1.0 / M)

    # Whole problem in a single kernel invocation (no grid); everything is VMEM-resident.
    out_t = pl.pallas_call(
        kernel,
        out_shape=jax.ShapeDtypeStruct((C_out, M_pad), jnp.float32),
        in_specs=[
            pl.BlockSpec(memory_space=pltpu.MemorySpace.SMEM),   # alpha (1,)
            pl.BlockSpec(memory_space=pltpu.MemorySpace.VMEM),   # weight (C_out, K)
            pl.BlockSpec(memory_space=pltpu.MemorySpace.VMEM),   # patches (K, M_pad)
            pl.BlockSpec(memory_space=pltpu.MemorySpace.VMEM),   # gamma (C_out, 1)
            pl.BlockSpec(memory_space=pltpu.MemorySpace.VMEM),   # beta (C_out, 1)
        ],
        out_specs=pl.BlockSpec(memory_space=pltpu.MemorySpace.VMEM),
    )(alpha, w2d, patches_t, gamma_c, beta_c)

    # Back to NCHW: contiguous lane slice, reshape, transpose (fuses under jit).
    out = out_t[:, :M].reshape(C_out, N, Ho, Wo).transpose(1, 0, 2, 3)
    return out


@jax.jit
def reference(x, conv_w, gamma, beta, alpha):
    y = lax.conv_general_dilated(
        x, conv_w, window_strides=(2, 2), padding=((2, 2), (2, 2)),
        dimension_numbers=("NCHW", "OIHW", "NCHW"))
    mean = jnp.mean(y, axis=(0, 2, 3), keepdims=True)
    var = jnp.mean((y - mean) ** 2, axis=(0, 2, 3), keepdims=True)
    y = (y - mean) * lax.rsqrt(var + BN_EPS)
    y = y * gamma.reshape(1, -1, 1, 1) + beta.reshape(1, -1, 1, 1)
    return jnp.where(y >= 0.0, y, alpha[0] * y)


if __name__ == "__main__":
    key = jax.random.PRNGKey(0)
    k_x, k_w, k_g, k_b = jax.random.split(key, 4)

    # Small shapes consistent with the module: Conv2d(32, 32, ...) needs 32 input channels.
    N, C_in, H, W = 2, 32, 16, 16
    C_out = 32

    x = jax.random.normal(k_x, (N, C_in, H, W), dtype=jnp.float32)
    conv_w = jax.random.normal(k_w, (C_out, C_in, 2, 2), dtype=jnp.float32) * 0.1
    gamma = 1.0 + 0.1 * jax.random.normal(k_g, (C_out,), dtype=jnp.float32)
    beta = 0.1 * jax.random.normal(k_b, (C_out,), dtype=jnp.float32)
    alpha = jnp.array([0.25], dtype=jnp.float32)  # PyTorch PReLU default init

    out = jax.block_until_ready(model_with_prelu(x, conv_w, gamma, beta, alpha))
    ref = jax.block_until_ready(reference(x, conv_w, gamma, beta, alpha))

    assert out.shape == (N, C_out, 10, 10), out.shape
    np.testing.assert_allclose(np.asarray(out), np.asarray(ref), rtol=1e-4, atol=1e-4)
    print("KERNEL_OK")
</pallas_src>

<mosaic_0001>
module attributes {stable_mosaic.version = 11 : i64} {
  func.func @conv_bn_prelu_kernel(%arg0: memref<1xf32, #tpu.memory_space<smem>>, %arg1: memref<32x128xf32, #tpu.memory_space<vmem>>, %arg2: memref<128x256xf32, #tpu.memory_space<vmem>>, %arg3: memref<32x1xf32, #tpu.memory_space<vmem>>, %arg4: memref<32x1xf32, #tpu.memory_space<vmem>>, %arg5: memref<32x256xf32, #tpu.memory_space<vmem>>) attributes {dimension_semantics = [], scalar_prefetch = 0 : i64, scratch_operands = 0 : i64, tpu.core_type = #tpu.core_type<tc>} {
    %c0 = arith.constant 0 : index
    %c0_0 = arith.constant 0 : index
    %0 = vector.load %arg1[%c0, %c0_0] : memref<32x128xf32, #tpu.memory_space<vmem>>, vector<32x128xf32>
    %c0_1 = arith.constant 0 : index
    %c0_2 = arith.constant 0 : index
    %1 = vector.load %arg2[%c0_1, %c0_2] : memref<128x256xf32, #tpu.memory_space<vmem>>, vector<128x256xf32>
    %cst = arith.constant dense<0.000000e+00> : vector<32x256xf32>
    %2 = tpu.matmul %0, %1, %cst {dimension_numbers = #tpu.dot_dimension_numbers<[1], [0], [0], [1], [0, 0, 1, 1], [], []>} : vector<32x128xf32>, vector<128x256xf32>, vector<32x256xf32> -> vector<32x256xf32>
    %cst_3 = arith.constant dense<0.000000e+00> : vector<32xf32>
    %3 = vector.multi_reduction <add>, %2, %cst_3 [1] : vector<32x256xf32> to vector<32xf32>
    %4 = vector.shape_cast %3 : vector<32xf32> to vector<32x1xf32>
    %5 = arith.mulf %2, %2 : vector<32x256xf32>
    %cst_4 = arith.constant dense<0.000000e+00> : vector<32xf32>
    %6 = vector.multi_reduction <add>, %5, %cst_4 [1] : vector<32x256xf32> to vector<32xf32>
    %7 = vector.shape_cast %6 : vector<32xf32> to vector<32x1xf32>
    %cst_5 = arith.constant 5.000000e-03 : f32
    %8 = vector.broadcast %cst_5 : f32 to vector<32x1xf32>
    %9 = arith.mulf %4, %8 : vector<32x1xf32>
    %cst_6 = arith.constant 5.000000e-03 : f32
    %10 = vector.broadcast %cst_6 : f32 to vector<32x1xf32>
    %11 = arith.mulf %7, %10 : vector<32x1xf32>
    %12 = arith.mulf %9, %9 : vector<32x1xf32>
    %13 = arith.subf %11, %12 : vector<32x1xf32>
    %cst_7 = arith.constant 0.000000e+00 : f32
    %14 = vector.broadcast %cst_7 : f32 to vector<32x1xf32>
    %15 = arith.maximumf %13, %14 : vector<32x1xf32>
    %c0_8 = arith.constant 0 : index
    %c0_9 = arith.constant 0 : index
    %16 = vector.load %arg3[%c0_8, %c0_9] : memref<32x1xf32, #tpu.memory_space<vmem>>, vector<32x1xf32>
    %cst_10 = arith.constant 9.99999974E-6 : f32
    %17 = vector.broadcast %cst_10 : f32 to vector<32x1xf32>
    %18 = arith.addf %15, %17 : vector<32x1xf32>
    %19 = math.rsqrt %18 : vector<32x1xf32>
    %20 = arith.mulf %16, %19 : vector<32x1xf32>
    %c0_11 = arith.constant 0 : index
    %c0_12 = arith.constant 0 : index
    %21 = vector.load %arg4[%c0_11, %c0_12] : memref<32x1xf32, #tpu.memory_space<vmem>>, vector<32x1xf32>
    %22 = arith.mulf %9, %20 : vector<32x1xf32>
    %23 = arith.subf %21, %22 : vector<32x1xf32>
    %24 = vector.broadcast %20 : vector<32x1xf32> to vector<32x256xf32>
    %25 = arith.mulf %2, %24 : vector<32x256xf32>
    %26 = vector.broadcast %23 : vector<32x1xf32> to vector<32x256xf32>
    %27 = arith.addf %25, %26 : vector<32x256xf32>
    %c0_13 = arith.constant 0 : index
    %28 = memref.load %arg0[%c0_13] : memref<1xf32, #tpu.memory_space<smem>>
    %cst_14 = arith.constant 0.000000e+00 : f32
    %29 = vector.broadcast %cst_14 : f32 to vector<32x256xf32>
    %30 = arith.cmpf oge, %27, %29 : vector<32x256xf32>
    %31 = vector.broadcast %28 : f32 to vector<32x256xf32>
    %32 = arith.mulf %31, %27 : vector<32x256xf32>
    %33 = arith.select %30, %27, %32 : vector<32x256xi1>, vector<32x256xf32>
    %c0_15 = arith.constant 0 : index
    %c0_16 = arith.constant 0 : index
    %34 = vector.load %arg5[%c0_15, %c0_16] : memref<32x256xf32, #tpu.memory_space<vmem>>, vector<32x256xf32>
    tpu.vector_store %arg5[%c0_15, %c0_16], %33 {strides = array<i32>} : memref<32x256xf32, #tpu.memory_space<vmem>>, vector<32x256xf32>,
    return
  }
}

</mosaic_0001>

<llo_original>
// kernel: model_with_prelu.1
$region0: #{model_with_prelu.1}
  #allocation0 [shape = 'u32[]', space=smem, size = 0x4, offset = 0x4, fixed_abs, tag = 'smem constant byte address 0x4 - core index']
  #allocation1 [shape = 'u32[72,128]{1,0:T(1,128)}', space=vmem, size = 0x9000, scoped, tag = 'internal scratch']
  #allocation2 [shape = 'f32[1]{0:T(128)S(6)}', space=smem, size = 0x200, scoped, tag = 'scoped memory for model_with_prelu.1']
  %s0 = inlined_call_operand.<no memory space> [shape: f32[1], index: 0, kind: input, shape index: {}]
  %s1 = inlined_call_operand.vmem [shape: f32[32,128], index: 1, kind: input, shape index: {}]
  %s2 = inlined_call_operand.vmem [shape: f32[128,256], index: 2, kind: input, shape index: {}]
  %s3 = inlined_call_operand.vmem [shape: f32[32,1], index: 3, kind: input, shape index: {}]
  %s4 = inlined_call_operand.vmem [shape: f32[32,1], index: 4, kind: input, shape index: {}]
  %s5 = inlined_call_operand.vmem [shape: f32[32,256], index: 5, kind: output, shape index: {}]
  %s6 = sld [smem:[#allocation0]]
  $region30: #{model_with_prelu.1} parent=0
    _
  %s8 = ssub.s32 1, %s6
  %s9 = scalar_select 0, %s8, %s6
  %10 = sst [smem:[#allocation2]] %s0
  // Predicated region
  $region2: #{model_with_prelu.1} parent=0 // pred_check
    _
  $region3: #{model_with_prelu.1} parent=0 // pred_check_branch
    %12 = sbr.rel (0) target = $region5
  $region4: #{model_with_prelu.1} parent=0 // pred_region
    _
  $region5: #{model_with_prelu.1} parent=0 // pred_fallthru
    _
  // Predicated region
  $region6: #{model_with_prelu.1} parent=0 // pred_check
    _
  $region7: #{model_with_prelu.1} parent=0 // pred_check_branch
    %14 = sbr.rel (0) target = $region9
  $region8: #{model_with_prelu.1} parent=0 // pred_region
    _
  $region9: #{model_with_prelu.1} parent=0 // pred_fallthru
    _
  // Predicated region
  $region10: #{model_with_prelu.1} parent=0 // pred_check
    _
  $region11: #{model_with_prelu.1} parent=0 // pred_check_branch
    %16 = sbr.rel (0) target = $region13
  $region12: #{model_with_prelu.1} parent=0 // pred_region
    _
  $region13: #{model_with_prelu.1} parent=0 // pred_fallthru
    _
  // Predicated region
  $region14: #{model_with_prelu.1} parent=0 // pred_check
    _
  $region15: #{model_with_prelu.1} parent=0 // pred_check_branch
    %18 = sbr.rel (0) target = $region17
  $region16: #{model_with_prelu.1} parent=0 // pred_region
    _
  $region17: #{model_with_prelu.1} parent=0 // pred_fallthru
    _
  // Predicated region
  $region18: #{model_with_prelu.1} parent=0 // pred_check
    _
  $region19: #{model_with_prelu.1} parent=0 // pred_check_branch
    %20 = sbr.rel (0) target = $region21
  $region20: #{model_with_prelu.1} parent=0 // pred_region
    _
  $region21: #{model_with_prelu.1} parent=0 // pred_fallthru
    _
  %v21 = vld [vmem:[%s1] sm:$0xff]
  %v22 = vld [vmem:[%s1 + $0x8] sm:$0xff]
  %v23 = vld [vmem:[%s1 + $0x10] sm:$0xff]
  %v24 = vld [vmem:[%s1 + $0x18] sm:$0xff]
  %v25 = vld [vmem:[%s2] sm:$0xff]
  %v26 = vld [vmem:[%s2 + $0x8] sm:$0xff]
  %v27 = vld [vmem:[%s2 + $0x10] sm:$0xff]
  %v28 = vld [vmem:[%s2 + $0x18] sm:$0xff]
  %v29 = vld [vmem:[%s2 + $0x20] sm:$0xff]
  %v30 = vld [vmem:[%s2 + $0x28] sm:$0xff]
  %v31 = vld [vmem:[%s2 + $0x30] sm:$0xff]
  %v32 = vld [vmem:[%s2 + $0x38] sm:$0xff]
  %v33 = vld [vmem:[%s2 + $0x40] sm:$0xff]
  %v34 = vld [vmem:[%s2 + $0x48] sm:$0xff]
  %v35 = vld [vmem:[%s2 + $0x50] sm:$0xff]
  %v36 = vld [vmem:[%s2 + $0x58] sm:$0xff]
  %v37 = vld [vmem:[%s2 + $0x60] sm:$0xff]
  %v38 = vld [vmem:[%s2 + $0x68] sm:$0xff]
  %v39 = vld [vmem:[%s2 + $0x70] sm:$0xff]
  %v40 = vld [vmem:[%s2 + $0x78] sm:$0xff]
  %v41 = vld [vmem:[%s2 + $0x80] sm:$0xff]
  %v42 = vld [vmem:[%s2 + $0x88] sm:$0xff]
  %v43 = vld [vmem:[%s2 + $0x90] sm:$0xff]
  %v44 = vld [vmem:[%s2 + $0x98] sm:$0xff]
  %v45 = vld [vmem:[%s2 + $0xa0] sm:$0xff]
  %v46 = vld [vmem:[%s2 + $0xa8] sm:$0xff]
  %v47 = vld [vmem:[%s2 + $0xb0] sm:$0xff]
  %v48 = vld [vmem:[%s2 + $0xb8] sm:$0xff]
  %v49 = vld [vmem:[%s2 + $0xc0] sm:$0xff]
  %v50 = vld [vmem:[%s2 + $0xc8] sm:$0xff]
  %v51 = vld [vmem:[%s2 + $0xd0] sm:$0xff]
  %v52 = vld [vmem:[%s2 + $0xd8] sm:$0xff]
  %v53 = vld [vmem:[%s2 + $0xe0] sm:$0xff]
  %v54 = vld [vmem:[%s2 + $0xe8] sm:$0xff]
  %v55 = vld [vmem:[%s2 + $0xf0] sm:$0xff]
  %v56 = vld [vmem:[%s2 + $0xf8] sm:$0xff]
  %57 = vmatpush.msra.mxu0 %v55
  %58 = vmatpush.msra.mxu0 %v53
  %59 = vmatpush.msra.mxu0 %v51
  %60 = vmatpush.msra.mxu0 %v49
  %61 = vmatpush.msra.mxu0 %v47
  %62 = vmatpush.msra.mxu0 %v45
  %63 = vmatpush.msra.mxu0 %v43
  %64 = vmatpush.msra.mxu0 %v41
  %65 = vmatpush.msra.mxu0 %v39
  %66 = vmatpush.msra.mxu0 %v37
  %67 = vmatpush.msra.mxu0 %v35
  %68 = vmatpush.msra.mxu0 %v33
  %69 = vmatpush.msra.mxu0 %v31
  %70 = vmatpush.msra.mxu0 %v29
  %71 = vmatpush.msra.mxu0 %v27
  %72 = vmatpush.msra.mxu0 %v25
  %73 = vmatmul.f32.gmra.mxu0 %v21
  %v74 = vpop.f32.mrf.mxu0
  %v75 = vadd.f32 0.0, %v74
  %76 = vmatmul.f32.gmra.mxu0 %v22
  %v77 = vpop.f32.mrf.mxu0
  %v78 = vadd.f32 0.0, %v77
  %79 = vmatmul.f32.gmra.mxu0 %v23
  %v80 = vpop.f32.mrf.mxu0
  %v81 = vadd.f32 0.0, %v80
  %82 = vmatmul.f32.gmra.mxu0 %v24
  %v83 = vpop.f32.mrf.mxu0
  %v84 = vadd.f32 0.0, %v83
  %85 = vdwg.mxu0
  %86 = vmatpush.msra.mxu0 %v56
  %87 = vmatpush.msra.mxu0 %v54
  %88 = vmatpush.msra.mxu0 %v52
  %89 = vmatpush.msra.mxu0 %v50
  %90 = vmatpush.msra.mxu0 %v48
  %91 = vmatpush.msra.mxu0 %v46
  %92 = vmatpush.msra.mxu0 %v44
  %93 = vmatpush.msra.mxu0 %v42
  %94 = vmatpush.msra.mxu0 %v40
  %95 = vmatpush.msra.mxu0 %v38
  %96 = vmatpush.msra.mxu0 %v36
  %97 = vmatpush.msra.mxu0 %v34
  %98 = vmatpush.msra.mxu0 %v32
  %99 = vmatpush.msra.mxu0 %v30
  %100 = vmatpush.msra.mxu0 %v28
  %101 = vmatpush.msra.mxu0 %v26
  %102 = vmatmul.f32.gmra.mxu0 %v21
  %v103 = vpop.f32.mrf.mxu0
  %v104 = vadd.f32 0.0, %v103
  %105 = vmatmul.f32.gmra.mxu0 %v22
  %v106 = vpop.f32.mrf.mxu0
  %v107 = vadd.f32 0.0, %v106
  %108 = vmatmul.f32.gmra.mxu0 %v23
  %v109 = vpop.f32.mrf.mxu0
  %v110 = vadd.f32 0.0, %v109
  %111 = vmatmul.f32.gmra.mxu0 %v24
  %v112 = vpop.f32.mrf.mxu0
  %v113 = vadd.f32 0.0, %v112
  %114 = vdwg.mxu0
  %v115 = vadd.f32 %v75, %v104
  %116 = vadd.xlane.f32.xlu0 %v115
  %v117 = vpop.xlane.xlu0 %116
  %v118 = vadd.f32 %v78, %v107
  %119 = vadd.xlane.f32.xlu0 %v118
  %v120 = vpop.xlane.xlu0 %119
  %v121 = vadd.f32 %v81, %v110
  %122 = vadd.xlane.f32.xlu0 %v121
  %v123 = vpop.xlane.xlu0 %122
  %v124 = vadd.f32 %v84, %v113
  %125 = vadd.xlane.f32.xlu0 %v124
  %v126 = vpop.xlane.xlu0 %125
  %v127 = vmul.f32 %v75, %v75
  %v128 = vmul.f32 %v104, %v104
  %v129 = vmul.f32 %v78, %v78
  %v130 = vmul.f32 %v107, %v107
  %v131 = vmul.f32 %v81, %v81
  %v132 = vmul.f32 %v110, %v110
  %v133 = vmul.f32 %v84, %v84
  %v134 = vmul.f32 %v113, %v113
  %v135 = vadd.f32 %v127, %v128
  %136 = vadd.xlane.f32.xlu0 %v135
  %v137 = vpop.xlane.xlu0 %136
  %v138 = vadd.f32 %v129, %v130
  %139 = vadd.xlane.f32.xlu0 %v138
  %v140 = vpop.xlane.xlu0 %139
  %v141 = vadd.f32 %v131, %v132
  %142 = vadd.xlane.f32.xlu0 %v141
  %v143 = vpop.xlane.xlu0 %142
  %v144 = vadd.f32 %v133, %v134
  %145 = vadd.xlane.f32.xlu0 %v144
  %v146 = vpop.xlane.xlu0 %145
  %v147 = vmul.f32 %v117, 0.005
  %v148 = vmul.f32 %v120, 0.005
  %v149 = vmul.f32 %v123, 0.005
  %v150 = vmul.f32 %v126, 0.005
  %v151 = vmul.f32 %v137, 0.005
  %v152 = vmul.f32 %v140, 0.005
  %v153 = vmul.f32 %v143, 0.005
  %v154 = vmul.f32 %v146, 0.005
  %v155 = vmul.f32 %v147, %v147
  %v156 = vmul.f32 %v148, %v148
  %v157 = vmul.f32 %v149, %v149
  %v158 = vmul.f32 %v150, %v150
  %v159 = vsub.f32 %v151, %v155
  %v160 = vsub.f32 %v152, %v156
  %v161 = vsub.f32 %v153, %v157
  %v162 = vsub.f32 %v154, %v158
  %v163 = vmax.f32 %v159, 0.0
  %v164 = vmax.f32 %v160, 0.0
  %v165 = vmax.f32 %v161, 0.0
  %v166 = vmax.f32 %v162, 0.0
  %v167 = vld [vmem:[%s3] sm:$0xff]
  %v168 = vld [vmem:[%s3 + $0x8] sm:$0xff]
  %v169 = vld [vmem:[%s3 + $0x10] sm:$0xff]
  %v170 = vld [vmem:[%s3 + $0x18] sm:$0xff]
  %v171 = vadd.f32 %v163, 1e-05
  %v172 = vadd.f32 %v164, 1e-05
  %v173 = vadd.f32 %v165, 1e-05
  %v174 = vadd.f32 %v166, 1e-05
  %v175 = vrsqrt.pop %v171
  %v176 = vmul.f32 %v175, %v171
  %v177 = vmul.f32 %v176, %v175
  %v178 = vmul.f32 0.5, %v177
  %v179 = vsub.f32 1.5, %v178
  %v180 = vmul.f32 %v175, %v179
  %vm181 = vweird.f32 %v171
  %vm182 = vweird.f32 %v175
  %vm183 = vmor %vm181, %vm182
  %v184 = vsel %vm183, %v175, %v180
  %v185 = vrsqrt.pop %v172
  %v186 = vmul.f32 %v185, %v172
  %v187 = vmul.f32 %v186, %v185
  %v188 = vmul.f32 0.5, %v187
  %v189 = vsub.f32 1.5, %v188
  %v190 = vmul.f32 %v185, %v189
  %vm191 = vweird.f32 %v172
  %vm192 = vweird.f32 %v185
  %vm193 = vmor %vm191, %vm192
  %v194 = vsel %vm193, %v185, %v190
  %v195 = vrsqrt.pop %v173
  %v196 = vmul.f32 %v195, %v173
  %v197 = vmul.f32 %v196, %v195
  %v198 = vmul.f32 0.5, %v197
  %v199 = vsub.f32 1.5, %v198
  %v200 = vmul.f32 %v195, %v199
  %vm201 = vweird.f32 %v173
  %vm202 = vweird.f32 %v195
  %vm203 = vmor %vm201, %vm202
  %v204 = vsel %vm203, %v195, %v200
  %v205 = vrsqrt.pop %v174
  %v206 = vmul.f32 %v205, %v174
  %v207 = vmul.f32 %v206, %v205
  %v208 = vmul.f32 0.5, %v207
  %v209 = vsub.f32 1.5, %v208
  %v210 = vmul.f32 %v205, %v209
  %vm211 = vweird.f32 %v174
  %vm212 = vweird.f32 %v205
  %vm213 = vmor %vm211, %vm212
  %v214 = vsel %vm213, %v205, %v210
  %v215 = vmul.f32 %v167, %v184
  %v216 = vmul.f32 %v168, %v194
  %v217 = vmul.f32 %v169, %v204
  %v218 = vmul.f32 %v170, %v214
  %v219 = vld [vmem:[%s4] sm:$0xff]
  %v220 = vld [vmem:[%s4 + $0x8] sm:$0xff]
  %v221 = vld [vmem:[%s4 + $0x10] sm:$0xff]
  %v222 = vld [vmem:[%s4 + $0x18] sm:$0xff]
  %v223 = vmul.f32 %v147, %v215
  %v224 = vmul.f32 %v148, %v216
  %v225 = vmul.f32 %v149, %v217
  %v226 = vmul.f32 %v150, %v218
  %v227 = vsub.f32 %v219, %v223
  %v228 = vsub.f32 %v220, %v224
  %v229 = vsub.f32 %v221, %v225
  %v230 = vsub.f32 %v222, %v226
  %232 = vset.pattern.permute.xlu0 0
  %233 = vperm.xlu0 %232, %v215
  %v234 = vpop.permute.xlu0 %233
  %237 = vset.pattern.permute.xlu0 0
  %238 = vperm.xlu0 %237, %v216
  %v239 = vpop.permute.xlu0 %238
  %242 = vset.pattern.permute.xlu0 0
  %243 = vperm.xlu0 %242, %v217
  %v244 = vpop.permute.xlu0 %243
  %247 = vset.pattern.permute.xlu0 0
  %248 = vperm.xlu0 %247, %v218
  %v249 = vpop.permute.xlu0 %248
  %v251 = vmul.f32 %v75, %v234
  %v252 = vmul.f32 %v104, %v234
  %v253 = vmul.f32 %v78, %v239
  %v254 = vmul.f32 %v107, %v239
  %v255 = vmul.f32 %v81, %v244
  %v256 = vmul.f32 %v110, %v244
  %v257 = vmul.f32 %v84, %v249
  %v258 = vmul.f32 %v113, %v249
  %260 = vset.pattern.permute.xlu0 0
  %261 = vperm.xlu0 %260, %v227
  %v262 = vpop.permute.xlu0 %261
  %265 = vset.pattern.permute.xlu0 0
  %266 = vperm.xlu0 %265, %v228
  %v267 = vpop.permute.xlu0 %266
  %270 = vset.pattern.permute.xlu0 0
  %271 = vperm.xlu0 %270, %v229
  %v272 = vpop.permute.xlu0 %271
  %275 = vset.pattern.permute.xlu0 0
  %276 = vperm.xlu0 %275, %v230
  %v277 = vpop.permute.xlu0 %276
  %v279 = vadd.f32 %v251, %v262
  %v280 = vadd.f32 %v252, %v262
  %v281 = vadd.f32 %v253, %v267
  %v282 = vadd.f32 %v254, %v267
  %v283 = vadd.f32 %v255, %v272
  %v284 = vadd.f32 %v256, %v272
  %v285 = vadd.f32 %v257, %v277
  %v286 = vadd.f32 %v258, %v277
  %s287 = sld [smem:[#allocation2]]
  %vm288 = vcmp.ge.f32.partialorder %v279, 0.0
  %vm289 = vcmp.ge.f32.partialorder %v280, 0.0
  %vm290 = vcmp.ge.f32.partialorder %v281, 0.0
  %vm291 = vcmp.ge.f32.partialorder %v282, 0.0
  %vm292 = vcmp.ge.f32.partialorder %v283, 0.0
  %vm293 = vcmp.ge.f32.partialorder %v284, 0.0
  %vm294 = vcmp.ge.f32.partialorder %v285, 0.0
  %vm295 = vcmp.ge.f32.partialorder %v286, 0.0
  %v296 = vstv %s287
  %v297 = vmul.f32 %v296, %v279
  %v298 = vmul.f32 %v296, %v280
  %v299 = vmul.f32 %v296, %v281
  %v300 = vmul.f32 %v296, %v282
  %v301 = vmul.f32 %v296, %v283
  %v302 = vmul.f32 %v296, %v284
  %v303 = vmul.f32 %v296, %v285
  %v304 = vmul.f32 %v296, %v286
  %v305 = vsel %vm288, %v279, %v297
  %v306 = vsel %vm289, %v280, %v298
  %v307 = vsel %vm290, %v281, %v299
  %v308 = vsel %vm291, %v282, %v300
  %v309 = vsel %vm292, %v283, %v301
  %v310 = vsel %vm293, %v284, %v302
  %v311 = vsel %vm294, %v285, %v303
  %v312 = vsel %vm295, %v286, %v304
  %313 = vst [vmem:[%s5] sm:$0xff] %v305
  %314 = vst [vmem:[%s5 + $0x8] sm:$0xff] %v306
  %315 = vst [vmem:[%s5 + $0x10] sm:$0xff] %v307
  %316 = vst [vmem:[%s5 + $0x18] sm:$0xff] %v308
  %317 = vst [vmem:[%s5 + $0x20] sm:$0xff] %v309
  %318 = vst [vmem:[%s5 + $0x28] sm:$0xff] %v310
  %319 = vst [vmem:[%s5 + $0x30] sm:$0xff] %v311
  %320 = vst [vmem:[%s5 + $0x38] sm:$0xff] %v312
  // Predicated region
  $region22: #{model_with_prelu.1} parent=0 // pred_check
    _
  $region23: #{model_with_prelu.1} parent=0 // pred_check_branch
    %322 = sbr.rel (0) target = $region25
  $region24: #{model_with_prelu.1} parent=0 // pred_region
    _
  $region25: #{model_with_prelu.1} parent=0 // pred_fallthru
    _
  // Predicated region
  $region26: #{model_with_prelu.1} parent=0 // pred_check
    _
  $region27: #{model_with_prelu.1} parent=0 // pred_check_branch
    %324 = sbr.rel (0) target = $region29
  $region28: #{model_with_prelu.1} parent=0 // pred_region
    _
  $region29: #{model_with_prelu.1} parent=0 // pred_fallthru
    _

</llo_original>
